<compile_context>
chip_gen: v7x
topology: tpu7x:2x2x1
jax: 0.10.0
libtpu: 0.0.40
codegen_flags: <defaults>
</compile_context>

<pallas_src>
import jax
import jax.numpy as jnp
from jax.experimental import pallas as pl
from jax.experimental.pallas import tpu as pltpu


_LANES = 128
_SUBLANE_BY_ITEMSIZE = {4: 8, 2: 16, 1: 32}


def _sublane_mult(dtype):
    return _SUBLANE_BY_ITEMSIZE.get(jnp.dtype(dtype).itemsize, 8)


def _round_up(x, m):
    return ((x + m - 1) // m) * m


def _device_kind():
    try:
        return jax.devices()[0].device_kind.lower()
    except Exception:
        return ""


def _vmem_capacity_bytes():
    """Physical VMEM per TensorCore (chip-aware; v7x has 64 MiB, others 128 MiB)."""
    try:
        info = pltpu.get_tpu_info()
        for name in ("vmem_capacity_bytes", "vmem_bytes", "vmem_size_bytes"):
            v = getattr(info, name, None)
            if isinstance(v, int) and v > 0:
                return v
    except Exception:
        pass
    kind = _device_kind()
    if "7" in kind:
        return 64 * 1024 * 1024
    return 128 * 1024 * 1024


def _tensorcores_per_device():
    """TensorCores per JAX device (1 on v5e/v6e, 2 on v4/v5p megacore and v7x)."""
    try:
        info = pltpu.get_tpu_info()
        for name in ("num_cores", "core_count", "num_tensorcores", "tensor_core_count"):
            v = getattr(info, name, None)
            if isinstance(v, int) and v > 0:
                return v
    except Exception:
        pass
    kind = _device_kind()
    if "lite" in kind or "v5e" in kind or "v6e" in kind or "v2" in kind or "v3" in kind:
        return 1
    if "v4" in kind or "v5p" in kind or "v5" in kind or "7" in kind:
        return 2
    return 1


def _flatten_rows(x):
    """Flatten to (rows, 128).  Only a <128-element tail is ever padded (zeros)."""
    flat = x.reshape(-1)
    n = int(flat.shape[0])
    pad = (-n) % _LANES
    if pad:
        # Pred and true are padded identically with zeros, so the pad contributes
        # exactly 0 to both MSE and L1 sums (the mean divides by the original n).
        flat = jnp.pad(flat, (0, pad))
    return flat.reshape(-1, _LANES), n


def _make_kernel(loss_types, n, tm, steps, rows, need_mask, lanes):
    def kernel(*refs):
        in_refs = refs[: 2 * n]
        o_ref = refs[2 * n]          # (n, 8, lanes) f32, resident across the i axis

        i = pl.program_id(1)         # reduction ("arbitrary") axis

        @pl.when(i == 0)
        def _init():
            o_ref[...] = jnp.zeros_like(o_ref)

        if need_mask:
            g0 = (pl.program_id(0) * steps + i) * tm
            row_id = jax.lax.broadcasted_iota(jnp.int32, (tm, lanes), 0) + g0
            valid = row_id < rows    # rows, tm, steps are static Python ints

        for j in range(n):
            p = in_refs[2 * j][...]
            t = in_refs[2 * j + 1][...]
            if p.dtype != jnp.float32:
                p = p.astype(jnp.float32)
            if t.dtype != jnp.float32:
                t = t.astype(jnp.float32)
            d = p - t
            if loss_types[j] == "mse":
                v = d * d
            elif loss_types[j] == "l1":
                v = jnp.abs(d)
            else:
                raise ValueError(f"unsupported loss type: {loss_types[j]}")
            if need_mask:
                v = jnp.where(valid, v, jnp.float32(0.0))
            # Fold (tm, lanes) -> (8, lanes): pure vreg-wise VPU adds (no per-step
            # cross-lane/XLU reduce); the full reduce happens once in the wrapper.
            o_ref[j, :, :] += v.reshape(tm // 8, 8, lanes).sum(axis=0)

    return kernel


def fused_weighted_losses(y_preds, y_trues, loss_types, alphas):
    """Compute [alpha_j * mean_loss_j(y_preds[j], y_trues[j])] in one pallas_call.

    Requires all tensors to share shape & dtype (mixed shapes use one call per
    term).  Returns a list of scalar float32 values.
    """
    n = len(loss_types)
    assert len(y_preds) == len(y_trues) == len(alphas) == n and n >= 1
    for lt in loss_types:
        assert lt in ("mse", "l1"), f"unsupported loss type: {lt}"

    dtype = y_preds[0].dtype
    base_shape = y_preds[0].shape
    sub = _sublane_mult(dtype)

    flats, n_totals = [], []
    for yp, yt in zip(y_preds, y_trues):
        assert yp.shape == base_shape and yt.shape == base_shape
        assert yp.dtype == dtype and yt.dtype == dtype
        p2, nt = _flatten_rows(yp)
        t2, _ = _flatten_rows(yt)
        flats += [p2, t2]
        n_totals.append(nt)

    rows = int(flats[0].shape[0])
    itemsize = jnp.dtype(dtype).itemsize

    vmem_phys = _vmem_capacity_bytes()
    cores = _tensorcores_per_device()
    # Only split across TensorCores when there is real work per core.
    splits = cores if (cores > 1 and rows >= cores * 256) else 1

    # --- Tile sizing: budget the double-buffered input footprint (2 buffers x
    # 2n inputs x tm x 128 x itemsize) chip-aware; multi-MiB blocks, never 8-row.
    io_budget = min(48 << 20, int(vmem_phys * 0.5))
    tm = io_budget // (4 * n * _LANES * itemsize)
    tm = max(sub, (tm // sub) * sub)
    rows_per_split = _round_up(pl.cdiv(rows, splits), sub)
    tm = min(tm, rows_per_split)
    steps = pl.cdiv(rows, splits * tm)
    # Rebalance so the grid overshoot past `rows` is less than one tile.
    tm = max(sub, _round_up(pl.cdiv(rows, splits * steps), sub))
    coverage = splits * steps * tm
    need_mask = coverage != rows
    nblocks_data = pl.cdiv(rows, tm)

    footprint_in = 4 * n * tm * _LANES * itemsize
    vmem_limit = int(min(vmem_phys * 0.9, max(32 << 20, footprint_in + (16 << 20))))

    if need_mask:
        # Clamp fully-out-of-range blocks onto the last valid block (their
        # contribution is masked to zero in-kernel).
        def in_map(c, i):
            return (jnp.minimum(c * steps + i, nblocks_data - 1), 0)
    else:
        def in_map(c, i):
            return (c * steps + i, 0)

    in_specs = [pl.BlockSpec((tm, _LANES), in_map) for _ in range(2 * n)]
    # Per-split, per-term (8, 128) partial-sum blocks; lane-dense, resident
    # across the reduction axis.
    out_spec = pl.BlockSpec((None, n, 8, _LANES), lambda c, i: (c, 0, 0, 0))

    kernel = _make_kernel(tuple(loss_types), n, tm, steps, rows, need_mask, _LANES)

    bytes_in = sum(int(f.size) * itemsize for f in flats)
    cost = pl.CostEstimate(
        flops=3 * sum(int(t) for t in n_totals),
        transcendentals=0,
        bytes_accessed=bytes_in + splits * n * 8 * _LANES * 4,
    )

    def _launch(lead_sem):
        return pl.pallas_call(
            kernel,
            out_shape=jax.ShapeDtypeStruct((splits, n, 8, _LANES), jnp.float32),
            grid_spec=pltpu.PrefetchScalarGridSpec(
                num_scalar_prefetch=0,
                grid=(splits, steps),
                in_specs=in_specs,
                out_specs=out_spec,
            ),
            compiler_params=pltpu.CompilerParams(
                dimension_semantics=(lead_sem, pltpu.ARBITRARY),
                vmem_limit_bytes=vmem_limit,
            ),
            cost_estimate=cost,
        )(*flats)

    if splits > 1:
        core_parallel = getattr(pltpu, "CORE_PARALLEL", pltpu.PARALLEL)
        try:
            partials = _launch(core_parallel)      # real 2-TC split (v7x / megacore)
        except Exception:
            partials = _launch(pltpu.PARALLEL)     # safe fallback
    else:
        partials = _launch(pltpu.ARBITRARY)

    # Tiny final reduce + alpha / mean scaling on (splits, n, 8, 128) partials.
    sums = jnp.sum(partials, axis=(0, 2, 3))       # (n,)
    return [jnp.float32(alphas[j]) * sums[j] / jnp.float32(n_totals[j])
            for j in range(n)]


class WeightedSumLoss:
    """JAX/Pallas port of the PyTorch WeightedSumLoss module.

    loss_functions is a list of "mse" / "l1" strings (stand-ins for
    nn.MSELoss() / nn.L1Loss() with default mean reduction).
    """

    def __init__(self, loss_functions, alphas):
        self.loss_types = list(loss_functions)
        self.alphas = list(alphas)

    def __call__(self, y_pred, y_true):
        # Mirrors: [alpha * loss_fn(yp, yt) for loss_fn, alpha, yp, yt in zip(...)]
        y_pred = list(y_pred)
        y_true = list(y_true)
        same = all(
            (x.shape == y_pred[0].shape and x.dtype == y_pred[0].dtype)
            for x in y_pred + y_true
        )
        if same:
            return fused_weighted_losses(y_pred, y_true, self.loss_types, self.alphas)
        # TODO(synk): mixed-shape terms could still be fused into one pallas_call
        # by concatenating the flattened (rows,128) arrays with per-term row
        # offsets via scalar prefetch; kept as one launch per term for now.
        outs = []
        for lt, a, yp, yt in zip(self.loss_types, self.alphas, y_pred, y_true):
            outs.extend(fused_weighted_losses([yp], [yt], [lt], [a]))
        return outs


def _reference(loss_types, alphas, y_pred, y_true):
    outs = []
    for lt, a, yp, yt in zip(loss_types, alphas, y_pred, y_true):
        d = yp.astype(jnp.float32) - yt.astype(jnp.float32)
        if lt == "mse":
            l = jnp.mean(d * d)
        else:
            l = jnp.mean(jnp.abs(d))
        outs.append(a * l)
    return outs


if __name__ == "__main__":
    key = jax.random.PRNGKey(0)
    k1, k2, k3, k4 = jax.random.split(key, 4)

    # Two loss terms, each with its own (y_pred, y_true) pair, NCHW [2, 4, 16, 16].
    shape = (2, 4, 16, 16)
    y_pred = [
        jax.random.normal(k1, shape, dtype=jnp.float32),
        jax.random.normal(k2, shape, dtype=jnp.float32),
    ]
    y_true = [
        jax.random.normal(k3, shape, dtype=jnp.float32),
        jax.random.normal(k4, shape, dtype=jnp.float32),
    ]

    loss_types = ["mse", "l1"]
    alphas = [0.7, 0.3]

    module = WeightedSumLoss(loss_types, alphas)
    outs = module(y_pred, y_true)
    outs = [jax.block_until_ready(o) for o in outs]

    refs = _reference(loss_types, alphas, y_pred, y_true)
    for o, r in zip(outs, refs):
        assert jnp.allclose(o, r, rtol=1e-5, atol=1e-5), (o, r)

    print("KERNEL_OK")
</pallas_src>

<mosaic_0001>
module attributes {stable_mosaic.version = 11 : i64} {
  func.func @kernel(%arg0: i32, %arg1: i32, %arg2: memref<16x128xf32, #tpu.memory_space<vmem>>, %arg3: memref<16x128xf32, #tpu.memory_space<vmem>>, %arg4: memref<16x128xf32, #tpu.memory_space<vmem>>, %arg5: memref<16x128xf32, #tpu.memory_space<vmem>>, %arg6: memref<1x2x8x128xf32, #tpu.memory_space<vmem>>) attributes {dimension_semantics = [#tpu.dimension_semantics<arbitrary>, #tpu.dimension_semantics<arbitrary>], iteration_bounds = array<i64: 1, 1>, scalar_prefetch = 0 : i64, scratch_operands = 0 : i64, tpu.core_type = #tpu.core_type<tc>, window_params = [{transform_indices = @transform_0, window_bounds = array<i64: 16, 128>}, {transform_indices = @transform_1, window_bounds = array<i64: 16, 128>}, {transform_indices = @transform_2, window_bounds = array<i64: 16, 128>}, {transform_indices = @transform_3, window_bounds = array<i64: 16, 128>}, {transform_indices = @transform_4, window_bounds = array<i64: 1, 2, 8, 128>}]} {
    %c0_i32 = arith.constant 0 : i32
    %0 = arith.cmpi eq, %arg1, %c0_i32 : i32
    %1 = arith.extui %0 : i1 to i32
    %c0_i32_0 = arith.constant 0 : i32
    %2 = arith.cmpi ne, %1, %c0_i32_0 : i32
    scf.if %2 {
      %cst_24 = arith.constant 0.000000e+00 : f32
      %27 = vector.broadcast %cst_24 : f32 to vector<2x8x128xf32>
      %c0_25 = arith.constant 0 : index
      %c0_26 = arith.constant 0 : index
      %c0_27 = arith.constant 0 : index
      %c0_28 = arith.constant 0 : index
      %28 = vector.load %arg6[%c0_25, %c0_26, %c0_27, %c0_28] : memref<1x2x8x128xf32, #tpu.memory_space<vmem>>, vector<1x2x8x128xf32>
      %29 = vector.shape_cast %28 : vector<1x2x8x128xf32> to vector<2x8x128xf32>
      %30 = vector.shape_cast %27 : vector<2x8x128xf32> to vector<1x2x8x128xf32>
      tpu.vector_store %arg6[%c0_25, %c0_26, %c0_27, %c0_28], %30 {strides = array<i32>} : memref<1x2x8x128xf32, #tpu.memory_space<vmem>>, vector<1x2x8x128xf32>,
    } else {
    }
    %c0 = arith.constant 0 : index
    %c0_1 = arith.constant 0 : index
    %3 = vector.load %arg2[%c0, %c0_1] : memref<16x128xf32, #tpu.memory_space<vmem>>, vector<16x128xf32>
    %c0_2 = arith.constant 0 : index
    %c0_3 = arith.constant 0 : index
    %4 = vector.load %arg3[%c0_2, %c0_3] : memref<16x128xf32, #tpu.memory_space<vmem>>, vector<16x128xf32>
    %5 = arith.subf %3, %4 : vector<16x128xf32>
    %6 = arith.mulf %5, %5 : vector<16x128xf32>
    %c0_4 = arith.constant 0 : index
    %c0_5 = arith.constant 0 : index
    %c0_6 = arith.constant 0 : index
    %c0_7 = arith.constant 0 : index
    %7 = vector.load %arg6[%c0_4, %c0_5, %c0_6, %c0_7] : memref<1x2x8x128xf32, #tpu.memory_space<vmem>>, vector<1x1x8x128xf32>
    %8 = vector.shape_cast %7 : vector<1x1x8x128xf32> to vector<8x128xf32>
    %9 = vector.shape_cast %6 : vector<16x128xf32> to vector<2x8x128xf32>
    %cst = arith.constant dense<0.000000e+00> : vector<8x128xf32>
    %10 = vector.multi_reduction <add>, %9, %cst [0] : vector<2x8x128xf32> to vector<8x128xf32>
    %11 = arith.addf %8, %10 : vector<8x128xf32>
    %c0_8 = arith.constant 0 : index
    %c0_9 = arith.constant 0 : index
    %c0_10 = arith.constant 0 : index
    %c0_11 = arith.constant 0 : index
    %12 = vector.load %arg6[%c0_8, %c0_9, %c0_10, %c0_11] : memref<1x2x8x128xf32, #tpu.memory_space<vmem>>, vector<1x1x8x128xf32>
    %13 = vector.shape_cast %12 : vector<1x1x8x128xf32> to vector<8x128xf32>
    %14 = vector.shape_cast %11 : vector<8x128xf32> to vector<1x1x8x128xf32>
    tpu.vector_store %arg6[%c0_8, %c0_9, %c0_10, %c0_11], %14 {strides = array<i32>} : memref<1x2x8x128xf32, #tpu.memory_space<vmem>>, vector<1x1x8x128xf32>,
    %c0_12 = arith.constant 0 : index
    %c0_13 = arith.constant 0 : index
    %15 = vector.load %arg4[%c0_12, %c0_13] : memref<16x128xf32, #tpu.memory_space<vmem>>, vector<16x128xf32>
    %c0_14 = arith.constant 0 : index
    %c0_15 = arith.constant 0 : index
    %16 = vector.load %arg5[%c0_14, %c0_15] : memref<16x128xf32, #tpu.memory_space<vmem>>, vector<16x128xf32>
    %17 = arith.subf %15, %16 : vector<16x128xf32>
    %18 = math.absf %17 : vector<16x128xf32>
    %c0_16 = arith.constant 0 : index
    %c1 = arith.constant 1 : index
    %c0_17 = arith.constant 0 : index
    %c0_18 = arith.constant 0 : index
    %19 = vector.load %arg6[%c0_16, %c1, %c0_17, %c0_18] : memref<1x2x8x128xf32, #tpu.memory_space<vmem>>, vector<1x1x8x128xf32>
    %20 = vector.shape_cast %19 : vector<1x1x8x128xf32> to vector<8x128xf32>
    %21 = vector.shape_cast %18 : vector<16x128xf32> to vector<2x8x128xf32>
    %cst_19 = arith.constant dense<0.000000e+00> : vector<8x128xf32>
    %22 = vector.multi_reduction <add>, %21, %cst_19 [0] : vector<2x8x128xf32> to vector<8x128xf32>
    %23 = arith.addf %20, %22 : vector<8x128xf32>
    %c0_20 = arith.constant 0 : index
    %c1_21 = arith.constant 1 : index
    %c0_22 = arith.constant 0 : index
    %c0_23 = arith.constant 0 : index
    %24 = vector.load %arg6[%c0_20, %c1_21, %c0_22, %c0_23] : memref<1x2x8x128xf32, #tpu.memory_space<vmem>>, vector<1x1x8x128xf32>
    %25 = vector.shape_cast %24 : vector<1x1x8x128xf32> to vector<8x128xf32>
    %26 = vector.shape_cast %23 : vector<8x128xf32> to vector<1x1x8x128xf32>
    tpu.vector_store %arg6[%c0_20, %c1_21, %c0_22, %c0_23], %26 {strides = array<i32>} : memref<1x2x8x128xf32, #tpu.memory_space<vmem>>, vector<1x1x8x128xf32>,
    return
  }
  func.func @transform_0(%arg0: i32, %arg1: i32) -> (i32, i32) {
    %c1_i32 = arith.constant 1 : i32
    %0 = arith.muli %arg0, %c1_i32 : i32
    %1 = arith.addi %0, %arg1 : i32
    %c0_i32 = arith.constant 0 : i32
    %c0_i32_0 = arith.constant 0 : i32
    return %1, %c0_i32 : i32, i32
  }
  func.func @transform_1(%arg0: i32, %arg1: i32) -> (i32, i32) {
    %c1_i32 = arith.constant 1 : i32
    %0 = arith.muli %arg0, %c1_i32 : i32
    %1 = arith.addi %0, %arg1 : i32
    %c0_i32 = arith.constant 0 : i32
    %c0_i32_0 = arith.constant 0 : i32
    return %1, %c0_i32 : i32, i32
  }
  func.func @transform_2(%arg0: i32, %arg1: i32) -> (i32, i32) {
    %c1_i32 = arith.constant 1 : i32
    %0 = arith.muli %arg0, %c1_i32 : i32
    %1 = arith.addi %0, %arg1 : i32
    %c0_i32 = arith.constant 0 : i32
    %c0_i32_0 = arith.constant 0 : i32
    return %1, %c0_i32 : i32, i32
  }
  func.func @transform_3(%arg0: i32, %arg1: i32) -> (i32, i32) {
    %c1_i32 = arith.constant 1 : i32
    %0 = arith.muli %arg0, %c1_i32 : i32
    %1 = arith.addi %0, %arg1 : i32
    %c0_i32 = arith.constant 0 : i32
    %c0_i32_0 = arith.constant 0 : i32
    return %1, %c0_i32 : i32, i32
  }
  func.func @transform_4(%arg0: i32, %arg1: i32) -> (i32, i32, i32, i32) {
    %c0_i32 = arith.constant 0 : i32
    %c0_i32_0 = arith.constant 0 : i32
    %c0_i32_1 = arith.constant 0 : i32
    %c0_i32_2 = arith.constant 0 : i32
    return %arg0, %c0_i32, %c0_i32_0, %c0_i32_1 : i32, i32, i32, i32
  }
}

</mosaic_0001>

<llo_original>
// kernel: tpu_custom_call.1
$region0: #{tpu_custom_call.1}
  #allocation0 [shape = 'u32[]', space=smem, size = 0x4, offset = 0x4, fixed_abs, tag = 'smem constant byte address 0x4 - core index']
  #allocation1 [shape = 'u32[144,128]{1,0:T(1,128)}', space=vmem, size = 0x12000, scoped, tag = 'internal scratch']
  %s0 = inlined_call_operand.hbm [shape: f32[16,128], index: 0, kind: input, shape index: {}]
  %s1 = inlined_call_operand.hbm [shape: f32[16,128], index: 1, kind: input, shape index: {}]
  %s2 = inlined_call_operand.hbm [shape: f32[16,128], index: 2, kind: input, shape index: {}]
  %s3 = inlined_call_operand.hbm [shape: f32[16,128], index: 3, kind: input, shape index: {}]
  %s4 = inlined_call_operand.hbm [shape: f32[1,2,8,128], index: 4, kind: output, shape index: {}]
  %s5 = sld [smem:[#allocation0]]
  $region46: #{tpu_custom_call.1} parent=0
    _
  %s7 = ssub.s32 1, %s5
  %s8 = scalar_select 0, %s7, %s5
  $region1: #{tpu_custom_call.1} parent=0
    #allocation2 [shape = 'u8[8192]{0}', space=vmem, size = 0x2000, scoped, tag = 'input window, operand 0, single buffered']
    #allocation3 [shape = 's32[1]{0}', space=sflag, size = 0x4, scoped, tag = 'scoped memory for tpu_custom_call.1']
    #allocation4 [shape = 's32[1]{0}', space=sflag, size = 0x4, scoped, tag = 'scoped memory for tpu_custom_call.1']
    #allocation5 [shape = 'u8[8192]{0}', space=vmem, size = 0x2000, scoped, tag = 'input window, operand 1, single buffered']
    #allocation6 [shape = 's32[1]{0}', space=sflag, size = 0x4, scoped, tag = 'scoped memory for tpu_custom_call.1']
    #allocation7 [shape = 'u8[8192]{0}', space=vmem, size = 0x2000, scoped, tag = 'input window, operand 2, single buffered']
    #allocation8 [shape = 'u8[8192]{0}', space=vmem, size = 0x2000, scoped, tag = 'input window, operand 3, single buffered']
    #allocation9 [shape = 's32[1]{0}', space=sflag, size = 0x4, scoped, tag = 'scoped memory for tpu_custom_call.1']
    #allocation10 [shape = 'u8[8192]{0}', space=vmem, size = 0x2000, scoped, tag = 'output window, operand 0, single buffered']
    %9 = vsyncpa [#allocation3], 0
    %10 = vsyncpa [#allocation6], 0
    %11 = vsyncpa [#allocation9], 0
    %12 = vsyncpa [#allocation4], 0
    // Predicated region
    $region2: #{tpu_custom_call.1} parent=1 // pred_check
      _
    $region3: #{tpu_custom_call.1} parent=1 // pred_check_branch
      %14 = sbr.rel (0) target = $region5
    $region4: #{tpu_custom_call.1} parent=1 // pred_region
      %s15 = sadd.s32 0, 0
      %s16 = smul.u32 2, %s15
      %s18 = ssub.s32 256, 256
      %19 = vsyncadd [#allocation3], %s18
      %s20 = smul.addr %s16, 128
      %s21 = scalar_lea.hbm %s0, %s20
      %s22 = sshll.u32 [#allocation2], 4
      %s23 = int_to_ptr.vmem [resolvable:$true] %s22
      %28 = dma.hbm_to_vmem [thread:$0]  %s21, 256, %s23, [#allocation3], 128, 128, 8
    $region5: #{tpu_custom_call.1} parent=1 // pred_fallthru
      _
    // Predicated region
    $region6: #{tpu_custom_call.1} parent=1 // pred_check
      _
    $region7: #{tpu_custom_call.1} parent=1 // pred_check_branch
      %30 = sbr.rel (0) target = $region9
    $region8: #{tpu_custom_call.1} parent=1 // pred_region
      %s31 = sadd.s32 0, 0
      %s32 = smul.u32 2, %s31
      %s34 = ssub.s32 256, 256
      %35 = vsyncadd [#allocation6], %s34
      %s36 = smul.addr %s32, 128
      %s37 = scalar_lea.hbm %s1, %s36
      %s38 = sshll.u32 [#allocation5], 4
      %s39 = int_to_ptr.vmem [resolvable:$true] %s38
      %44 = dma.hbm_to_vmem [thread:$0]  %s37, 256, %s39, [#allocation6], 128, 128, 8
    $region9: #{tpu_custom_call.1} parent=1 // pred_fallthru
      _
    // Predicated region
    $region10: #{tpu_custom_call.1} parent=1 // pred_check
      _
    $region11: #{tpu_custom_call.1} parent=1 // pred_check_branch
      %46 = sbr.rel (0) target = $region13
    $region12: #{tpu_custom_call.1} parent=1 // pred_region
      %s47 = sadd.s32 0, 0
      %s48 = smul.u32 2, %s47
      %s50 = ssub.s32 256, 256
      %51 = vsyncadd [#allocation6], %s50
      %s52 = smul.addr %s48, 128
      %s53 = scalar_lea.hbm %s2, %s52
      %s54 = sshll.u32 [#allocation7], 4
      %s55 = int_to_ptr.vmem [resolvable:$true] %s54
      %60 = dma.hbm_to_vmem [thread:$0]  %s53, 256, %s55, [#allocation6], 128, 128, 8
    $region13: #{tpu_custom_call.1} parent=1 // pred_fallthru
      _
    // Predicated region
    $region14: #{tpu_custom_call.1} parent=1 // pred_check
      _
    $region15: #{tpu_custom_call.1} parent=1 // pred_check_branch
      %62 = sbr.rel (0) target = $region17
    $region16: #{tpu_custom_call.1} parent=1 // pred_region
      %s63 = sadd.s32 0, 0
      %s64 = smul.u32 2, %s63
      %s66 = ssub.s32 256, 256
      %67 = vsyncadd [#allocation9], %s66
      %s68 = smul.addr %s64, 128
      %s69 = scalar_lea.hbm %s3, %s68
      %s70 = sshll.u32 [#allocation8], 4
      %s71 = int_to_ptr.vmem [resolvable:$true] %s70
      %76 = dma.hbm_to_vmem [thread:$0]  %s69, 256, %s71, [#allocation9], 128, 128, 8
    $region17: #{tpu_custom_call.1} parent=1 // pred_fallthru
      _
    // Predicated region
    $region18: #{tpu_custom_call.1} parent=1 // pred_check
      _
    $region19: #{tpu_custom_call.1} parent=1 // pred_check_branch
      %78 = sbr.rel (0) target = $region21
    $region20: #{tpu_custom_call.1} parent=1 // pred_region
      %79 = dma.done [#allocation3], 256
    $region21: #{tpu_custom_call.1} parent=1 // pred_fallthru
      _
    // Predicated region
    $region22: #{tpu_custom_call.1} parent=1 // pred_check
      _
    $region23: #{tpu_custom_call.1} parent=1 // pred_check_branch
      %81 = sbr.rel (0) target = $region25
    $region24: #{tpu_custom_call.1} parent=1 // pred_region
      %82 = dma.done [#allocation6], 256
    $region25: #{tpu_custom_call.1} parent=1 // pred_fallthru
      _
    // Predicated region
    $region26: #{tpu_custom_call.1} parent=1 // pred_check
      _
    $region27: #{tpu_custom_call.1} parent=1 // pred_check_branch
      %84 = sbr.rel (0) target = $region29
    $region28: #{tpu_custom_call.1} parent=1 // pred_region
      %85 = dma.done [#allocation6], 256
    $region29: #{tpu_custom_call.1} parent=1 // pred_fallthru
      _
    // Predicated region
    $region30: #{tpu_custom_call.1} parent=1 // pred_check
      _
    $region31: #{tpu_custom_call.1} parent=1 // pred_check_branch
      %87 = sbr.rel (0) target = $region33
    $region32: #{tpu_custom_call.1} parent=1 // pred_region
      %88 = dma.done [#allocation9], 256
    $region33: #{tpu_custom_call.1} parent=1 // pred_fallthru
      _
    %s89 = sadd.s32 0, 0
    %s90 = smul.u32 2, %s89
    %s91 = sadd.s32 0, 0
    %s92 = smul.u32 2, %s91
    %s93 = sadd.s32 0, 0
    %s94 = smul.u32 2, %s93
    %s95 = sadd.s32 0, 0
    %s96 = smul.u32 2, %s95
    %p97 = scmp.eq.s32.totalorder 0, 0
    // Predicated region
    $region34: #{tpu_custom_call.1} parent=1 // pred_check
      %p98 = pneg %p97
    $region35: #{tpu_custom_call.1} parent=1 // pred_check_branch
      %100 = sbr.rel (%p98) target = $region37
    $region36: #{tpu_custom_call.1} parent=1 // pred_region
      %101 = vst [vmem:[#allocation10] sm:$0xff] 0.0
      %102 = vst [vmem:[#allocation10 + $0x8] sm:$0xff] 0.0
    $region37: #{tpu_custom_call.1} parent=1 // pred_fallthru
      _
    %v103 = vld [vmem:[#allocation2] sm:$0xff]
    %v104 = vld [vmem:[#allocation2 + $0x8] sm:$0xff]
    %v105 = vld [vmem:[#allocation5] sm:$0xff]
    %v106 = vld [vmem:[#allocation5 + $0x8] sm:$0xff]
    %v107 = vsub.f32 %v103, %v105
    %v108 = vsub.f32 %v104, %v106
    %v109 = vmul.f32 %v107, %v107
    %v110 = vmul.f32 %v108, %v108
    %v111 = vld [vmem:[#allocation10] sm:$0xff]
    %v112 = vadd.f32 %v109, %v110
    %v113 = vadd.f32 %v111, %v112
    %114 = vst [vmem:[#allocation10] sm:$0xff] %v113
    %v115 = vld [vmem:[#allocation7] sm:$0xff]
    %v116 = vld [vmem:[#allocation7 + $0x8] sm:$0xff]
    %v117 = vld [vmem:[#allocation8] sm:$0xff]
    %v118 = vld [vmem:[#allocation8 + $0x8] sm:$0xff]
    %v119 = vsub.f32 %v115, %v117
    %v120 = vsub.f32 %v116, %v118
    %v121 = vand.u32 2147483647, %v119
    %v122 = vand.u32 2147483647, %v120
    %s123 = scalar_lea.vmem [#allocation10], 8
    %v124 = vld [vmem:[%s123] sm:$0xff]
    %v125 = vadd.f32 %v121, %v122
    %v126 = vadd.f32 %v124, %v125
    %127 = vst [vmem:[%s123] sm:$0xff] %v126
    // Predicated region
    $region38: #{tpu_custom_call.1} parent=1 // pred_check
      _
    $region39: #{tpu_custom_call.1} parent=1 // pred_check_branch
      %129 = sbr.rel (0) target = $region41
    $region40: #{tpu_custom_call.1} parent=1 // pred_region
      %s131 = ssub.s32 256, 256
      %132 = vsyncadd [#allocation4], %s131
      %s133 = sshll.u32 [#allocation10], 4
      %s134 = int_to_ptr.vmem [resolvable:$true] %s133
      %139 = dma.vmem_to_hbm [thread:$0]  %s134, 256, %s4, [#allocation4], 128, 128, 8
    $region41: #{tpu_custom_call.1} parent=1 // pred_fallthru
      _
    // Predicated region
    $region42: #{tpu_custom_call.1} parent=1 // pred_check
      _
    $region43: #{tpu_custom_call.1} parent=1 // pred_check_branch
      %141 = sbr.rel (0) target = $region45
    $region44: #{tpu_custom_call.1} parent=1 // pred_region
      %142 = dma.done [#allocation4], 256
    $region45: #{tpu_custom_call.1} parent=1 // pred_fallthru
      _
    %143 = vsyncpa [#allocation3], 1
    %144 = vsyncpa [#allocation6], 1
    %145 = vsyncpa [#allocation9], 1
    %146 = vsyncpa [#allocation4], 1

</llo_original>
